<compile_context>
chip_gen: v7x
topology: tpu7x:2x2x1
jax: 0.10.0
libtpu: 0.0.40
codegen_flags: <defaults>
</compile_context>

<pallas_src>
import jax
import jax.numpy as jnp
from jax.experimental import pallas as pl
from jax.experimental.pallas import tpu as pltpu

BN_EPS = 1e-5

# Fixed small configuration (one encoder block / one decoder block).
ENCODER_LAYERS = [64, 32]
LATENT_DIM = 16
DECODER_LAYERS = [32, 64]

D_IN = ENCODER_LAYERS[0]      # 64
H_ENC = ENCODER_LAYERS[1]     # 32
LAT = LATENT_DIM              # 16
H_DEC = DECODER_LAYERS[0]     # 32
D_OUT = DECODER_LAYERS[1]     # 64
IN_LANES = 128                # packed lane-dense input slab width
OUT_LANES = 128               # packed lane-dense output slab width

# ---------------------------------------------------------------------------
# Packed-parameter layout: one (400, 64) slab
#   rows [idx*64, idx*64+d_in)  -> weight block `idx` (W^T, zero padded)
#   rows [384, 400)             -> bias / gamma / beta rows
# ---------------------------------------------------------------------------
W_ROWS = 64      # rows per padded weight block (max D_in)
W_LANES = 64     # lanes of the slab (max D_out)

W_ENC, W_LAT, W_HEADS, W_FC3, W_FC4, W_DEC = range(6)   # execution order
_W_SHAPES = {
    W_ENC:   (D_IN,  H_ENC),
    W_LAT:   (H_ENC, LAT),
    W_HEADS: (LAT,   2 * LAT),   # fc21 | fc22 fused
    W_FC3:   (LAT,   LAT),
    W_FC4:   (LAT,   H_DEC),
    W_DEC:   (H_DEC, D_OUT),
}

(R_ENC_B, R_ENC_G, R_ENC_BE,
 R_LAT_B, R_LAT_G, R_LAT_BE,
 R_HEADS_B,
 R_FC3_B, R_FC3_G, R_FC3_BE,
 R_FC4_B, R_FC4_G, R_FC4_BE,
 R_DEC_B, R_DEC_G, R_DEC_BE) = range(16)
V_ROWS = 16
V_ROW0 = 6 * W_ROWS            # = 384, vector rows start here
P_ROWS = V_ROW0 + V_ROWS       # = 400 total slab rows


# ---------------------------------------------------------------------------
# Kernel
# ---------------------------------------------------------------------------
def vae_kernel(in_ref, p_ref, out_ref):
    vv = p_ref[V_ROW0:V_ROW0 + V_ROWS, :]           # (16, 64): tiny, lives in vregs

    def W(idx):
        d_in, d_out = _W_SHAPES[idx]
        r0 = idx * W_ROWS
        return p_ref[r0:r0 + d_in, :d_out]           # static slice of the param slab

    def V(row, d):
        return vv[row:row + 1, :d]                   # (1, d) broadcast row

    def linear(x, widx, brow):
        _, d_out = _W_SHAPES[widx]
        return jnp.dot(x, W(widx), preferred_element_type=jnp.float32) + V(brow, d_out)

    def bn(h, grow, berow):
        # BatchNorm1d, training-mode semantics: biased batch stats over axis 0.
        d = h.shape[-1]
        mean = jnp.mean(h, axis=0, keepdims=True)
        var = jnp.mean((h - mean) ** 2, axis=0, keepdims=True)
        return (h - mean) * jax.lax.rsqrt(var + BN_EPS) * V(grow, d) + V(berow, d)

    xin = in_ref[...]                                 # (B, 128) = [x | eps | pad]
    x = xin[:, :D_IN]
    eps = xin[:, D_IN:D_IN + LAT]

    # ---- encode ----
    h = jnp.maximum(bn(linear(x, W_ENC, R_ENC_B), R_ENC_G, R_ENC_BE), 0.0)     # encoder
    fc1 = jnp.maximum(bn(linear(h, W_LAT, R_LAT_B), R_LAT_G, R_LAT_BE), 0.0)   # latent
    # (the extra F.relu in encode() is a no-op after the block's ReLU -> dropped)

    # fused mu/logvar heads: y = [mu | logvar]   (B, 2*LAT)
    y = linear(fc1, W_HEADS, R_HEADS_B)
    mu = y[:, :LAT]
    logvar = y[:, LAT:2 * LAT]

    # ---- reparameterize: z = eps * exp(0.5*logvar) + mu ----
    z = eps * jnp.exp(0.5 * logvar) + mu

    # ---- decode ----
    h3 = jnp.maximum(bn(linear(z, W_FC3, R_FC3_B), R_FC3_G, R_FC3_BE), 0.0)    # relu(fc3)
    h4 = jnp.maximum(bn(linear(h3, W_FC4, R_FC4_B), R_FC4_G, R_FC4_BE), 0.0)   # relu(fc4)
    recon = bn(linear(h4, W_DEC, R_DEC_B), R_DEC_G, R_DEC_BE)                   # ReLU deleted

    # single lane-dense output slab: [recon(64) | mu(16) | logvar(16) | zero pad(32)]
    b = recon.shape[0]
    pad = jnp.zeros((b, OUT_LANES - (D_OUT + 2 * LAT)), jnp.float32)
    out_ref[...] = jnp.concatenate([recon, y, pad], axis=-1)


# ---------------------------------------------------------------------------
# Host-side parameter packing (layout plumbing, plain XLA ops, fused under jit)
# ---------------------------------------------------------------------------
def _pad2(a, rows, cols):
    return jnp.pad(a, ((0, rows - a.shape[0]), (0, cols - a.shape[1])))


def pack_params(p):
    heads_w = jnp.concatenate([p["fc21_w"], p["fc22_w"]], axis=1)   # (LAT, 2*LAT)
    heads_b = jnp.concatenate([p["fc21_b"], p["fc22_b"]], axis=1)   # (1, 2*LAT)

    w_blocks = [p["enc_w"], p["lat_w"], heads_w, p["fc3_w"], p["fc4_w"], p["dec_w"]]
    v_rows = [p["enc_b"], p["enc_g"], p["enc_be"],
              p["lat_b"], p["lat_g"], p["lat_be"],
              heads_b,
              p["fc3_b"], p["fc3_g"], p["fc3_be"],
              p["fc4_b"], p["fc4_g"], p["fc4_be"],
              p["dec_b"], p["dec_g"], p["dec_be"]]
    pslab = jnp.concatenate(
        [_pad2(w, W_ROWS, W_LANES) for w in w_blocks]
        + [_pad2(v, 1, W_LANES) for v in v_rows], axis=0)           # (400, 64)
    assert pslab.shape == (P_ROWS, W_LANES)
    return pslab


# ---------------------------------------------------------------------------
# Wrapper
# ---------------------------------------------------------------------------
@jax.jit
def vae_forward(x, eps, params):
    B = x.shape[0]
    pslab = pack_params(params)

    # single lane-dense input slab: [x(64) | eps(16) | zero pad(48)]
    xin = jnp.concatenate(
        [x, eps, jnp.zeros((B, IN_LANES - D_IN - LAT), jnp.float32)], axis=-1)

    vmem = pl.BlockSpec(memory_space=pltpu.MemorySpace.VMEM)

    flops = 2 * B * sum(di * do for di, do in _W_SHAPES.values()) \
        + 12 * B * (H_ENC + 3 * LAT + H_DEC + D_OUT)
    transcendentals = B * LAT + (H_ENC + 2 * LAT + H_DEC + D_OUT)
    bytes_accessed = 4 * (xin.size + pslab.size + B * OUT_LANES)

    out = pl.pallas_call(
        vae_kernel,
        out_shape=jax.ShapeDtypeStruct((B, OUT_LANES), jnp.float32),
        in_specs=[vmem, vmem],
        out_specs=vmem,
        cost_estimate=pl.CostEstimate(flops=flops,
                                      transcendentals=transcendentals,
                                      bytes_accessed=bytes_accessed),
    )(xin, pslab)

    recon = out[:, :D_OUT]
    mu = out[:, D_OUT:D_OUT + LAT]
    logvar = out[:, D_OUT + LAT:D_OUT + 2 * LAT]
    return recon, mu, logvar


# ---------------------------------------------------------------------------
# Deterministic parameter initialization (synthetic weights; no checkpoint)
# ---------------------------------------------------------------------------
def _lin_init(key, d_in, d_out):
    kw, kb = jax.random.split(key)
    w = jax.random.normal(kw, (d_in, d_out), dtype=jnp.float32) * 0.1
    b = jax.random.normal(kb, (1, d_out), dtype=jnp.float32) * 0.01
    return w, b


def _bn_init(d):
    return jnp.ones((1, d), jnp.float32), jnp.zeros((1, d), jnp.float32)


def init_params(key):
    keys = jax.random.split(key, 7)
    p = {}
    p["enc_w"], p["enc_b"] = _lin_init(keys[0], D_IN, H_ENC)
    p["enc_g"], p["enc_be"] = _bn_init(H_ENC)
    p["lat_w"], p["lat_b"] = _lin_init(keys[1], H_ENC, LAT)
    p["lat_g"], p["lat_be"] = _bn_init(LAT)
    p["fc21_w"], p["fc21_b"] = _lin_init(keys[2], LAT, LAT)
    p["fc22_w"], p["fc22_b"] = _lin_init(keys[3], LAT, LAT)
    p["fc3_w"], p["fc3_b"] = _lin_init(keys[4], LAT, LAT)
    p["fc3_g"], p["fc3_be"] = _bn_init(LAT)
    p["fc4_w"], p["fc4_b"] = _lin_init(keys[5], LAT, H_DEC)
    p["fc4_g"], p["fc4_be"] = _bn_init(H_DEC)
    p["dec_w"], p["dec_b"] = _lin_init(keys[6], H_DEC, D_OUT)
    p["dec_g"], p["dec_be"] = _bn_init(D_OUT)
    return p


# ---------------------------------------------------------------------------
# Pure-JAX reference (same math, outside Pallas) for correctness checking
# ---------------------------------------------------------------------------
def _ref_bn(h, g, be):
    mean = jnp.mean(h, axis=0, keepdims=True)
    var = jnp.mean((h - mean) ** 2, axis=0, keepdims=True)
    return (h - mean) * jax.lax.rsqrt(var + BN_EPS) * g + be


def _ref_block(x, w, b, g, be):
    return jnp.maximum(_ref_bn(x @ w + b, g, be), 0.0)


def vae_reference(x, eps, p):
    h = _ref_block(x, p["enc_w"], p["enc_b"], p["enc_g"], p["enc_be"])
    fc1 = _ref_block(h, p["lat_w"], p["lat_b"], p["lat_g"], p["lat_be"])
    fc1 = jnp.maximum(fc1, 0.0)
    mu = fc1 @ p["fc21_w"] + p["fc21_b"]
    logvar = fc1 @ p["fc22_w"] + p["fc22_b"]
    z = eps * jnp.exp(0.5 * logvar) + mu
    h3 = jnp.maximum(_ref_block(z, p["fc3_w"], p["fc3_b"], p["fc3_g"], p["fc3_be"]), 0.0)
    h4 = jnp.maximum(_ref_block(h3, p["fc4_w"], p["fc4_b"], p["fc4_g"], p["fc4_be"]), 0.0)
    recon = _ref_bn(h4 @ p["dec_w"] + p["dec_b"], p["dec_g"], p["dec_be"])
    return recon, mu, logvar


if __name__ == "__main__":
    B = 8
    key = jax.random.PRNGKey(0)
    kx, keps, kp = jax.random.split(key, 3)

    x = jax.random.normal(kx, (B, D_IN), dtype=jnp.float32)
    eps = jax.random.normal(keps, (B, LAT), dtype=jnp.float32)  # randn_like noise
    params = init_params(kp)

    recon, mu, logvar = vae_forward(x, eps, params)
    jax.block_until_ready((recon, mu, logvar))

    r_ref, m_ref, lv_ref = vae_reference(x, eps, params)
    assert recon.shape == (B, D_OUT)
    assert mu.shape == (B, LAT) and logvar.shape == (B, LAT)
    assert jnp.allclose(recon, r_ref, atol=1e-4, rtol=1e-4)
    assert jnp.allclose(mu, m_ref, atol=1e-4, rtol=1e-4)
    assert jnp.allclose(logvar, lv_ref, atol=1e-4, rtol=1e-4)

    print("KERNEL_OK")
</pallas_src>

<mosaic_0001>
module attributes {stable_mosaic.version = 11 : i64} {
  func.func @vae_kernel(%arg0: memref<8x128xf32, #tpu.memory_space<vmem>>, %arg1: memref<400x64xf32, #tpu.memory_space<vmem>>, %arg2: memref<8x128xf32, #tpu.memory_space<vmem>>) attributes {dimension_semantics = [], scalar_prefetch = 0 : i64, scratch_operands = 0 : i64, tpu.core_type = #tpu.core_type<tc>} {
    %c384 = arith.constant 384 : index
    %c0 = arith.constant 0 : index
    %0 = vector.load %arg1[%c384, %c0] : memref<400x64xf32, #tpu.memory_space<vmem>>, vector<16x64xf32>
    %c0_0 = arith.constant 0 : index
    %c0_1 = arith.constant 0 : index
    %1 = vector.load %arg0[%c0_0, %c0_1] : memref<8x128xf32, #tpu.memory_space<vmem>>, vector<8x128xf32>
    %2 = vector.extract_strided_slice %1 {offsets = [0, 0], sizes = [8, 64], strides = [1, 1]} : vector<8x128xf32> to vector<8x64xf32>
    %3 = vector.extract_strided_slice %1 {offsets = [0, 64], sizes = [8, 16], strides = [1, 1]} : vector<8x128xf32> to vector<8x16xf32>
    %c0_2 = arith.constant 0 : index
    %c0_3 = arith.constant 0 : index
    %4 = vector.load %arg1[%c0_2, %c0_3] : memref<400x64xf32, #tpu.memory_space<vmem>>, vector<64x32xf32>
    %cst = arith.constant dense<0.000000e+00> : vector<8x32xf32>
    %5 = tpu.matmul %2, %4, %cst {dimension_numbers = #tpu.dot_dimension_numbers<[1], [0], [0], [1], [0, 0, 1, 1], [], []>} : vector<8x64xf32>, vector<64x32xf32>, vector<8x32xf32> -> vector<8x32xf32>
    %6 = vector.extract_strided_slice %0 {offsets = [0, 0], sizes = [1, 32], strides = [1, 1]} : vector<16x64xf32> to vector<1x32xf32>
    %7 = vector.broadcast %6 : vector<1x32xf32> to vector<8x32xf32>
    %8 = arith.addf %5, %7 : vector<8x32xf32>
    %cst_4 = arith.constant dense<0.000000e+00> : vector<32xf32>
    %9 = vector.multi_reduction <add>, %8, %cst_4 [0] : vector<8x32xf32> to vector<32xf32>
    %10 = vector.shape_cast %9 : vector<32xf32> to vector<1x32xf32>
    %cst_5 = arith.constant 8.000000e+00 : f32
    %11 = vector.broadcast %cst_5 : f32 to vector<1x32xf32>
    %12 = arith.divf %10, %11 : vector<1x32xf32>
    %13 = vector.broadcast %12 : vector<1x32xf32> to vector<8x32xf32>
    %14 = arith.subf %8, %13 : vector<8x32xf32>
    %15 = arith.mulf %14, %14 : vector<8x32xf32>
    %cst_6 = arith.constant dense<0.000000e+00> : vector<32xf32>
    %16 = vector.multi_reduction <add>, %15, %cst_6 [0] : vector<8x32xf32> to vector<32xf32>
    %17 = vector.shape_cast %16 : vector<32xf32> to vector<1x32xf32>
    %cst_7 = arith.constant 8.000000e+00 : f32
    %18 = vector.broadcast %cst_7 : f32 to vector<1x32xf32>
    %19 = arith.divf %17, %18 : vector<1x32xf32>
    %20 = vector.broadcast %12 : vector<1x32xf32> to vector<8x32xf32>
    %21 = arith.subf %8, %20 : vector<8x32xf32>
    %cst_8 = arith.constant 9.99999974E-6 : f32
    %22 = vector.broadcast %cst_8 : f32 to vector<1x32xf32>
    %23 = arith.addf %19, %22 : vector<1x32xf32>
    %24 = math.rsqrt %23 : vector<1x32xf32>
    %25 = vector.broadcast %24 : vector<1x32xf32> to vector<8x32xf32>
    %26 = arith.mulf %21, %25 : vector<8x32xf32>
    %27 = vector.extract_strided_slice %0 {offsets = [1, 0], sizes = [1, 32], strides = [1, 1]} : vector<16x64xf32> to vector<1x32xf32>
    %28 = vector.broadcast %27 : vector<1x32xf32> to vector<8x32xf32>
    %29 = arith.mulf %26, %28 : vector<8x32xf32>
    %30 = vector.extract_strided_slice %0 {offsets = [2, 0], sizes = [1, 32], strides = [1, 1]} : vector<16x64xf32> to vector<1x32xf32>
    %31 = vector.broadcast %30 : vector<1x32xf32> to vector<8x32xf32>
    %32 = arith.addf %29, %31 : vector<8x32xf32>
    %cst_9 = arith.constant 0.000000e+00 : f32
    %33 = vector.broadcast %cst_9 : f32 to vector<8x32xf32>
    %34 = arith.maximumf %32, %33 : vector<8x32xf32>
    %c64 = arith.constant 64 : index
    %c0_10 = arith.constant 0 : index
    %35 = vector.load %arg1[%c64, %c0_10] : memref<400x64xf32, #tpu.memory_space<vmem>>, vector<32x16xf32>
    %cst_11 = arith.constant dense<0.000000e+00> : vector<8x16xf32>
    %36 = tpu.matmul %34, %35, %cst_11 {dimension_numbers = #tpu.dot_dimension_numbers<[1], [0], [0], [1], [0, 0, 1, 1], [], []>} : vector<8x32xf32>, vector<32x16xf32>, vector<8x16xf32> -> vector<8x16xf32>
    %37 = vector.extract_strided_slice %0 {offsets = [3, 0], sizes = [1, 16], strides = [1, 1]} : vector<16x64xf32> to vector<1x16xf32>
    %38 = vector.broadcast %37 : vector<1x16xf32> to vector<8x16xf32>
    %39 = arith.addf %36, %38 : vector<8x16xf32>
    %cst_12 = arith.constant dense<0.000000e+00> : vector<16xf32>
    %40 = vector.multi_reduction <add>, %39, %cst_12 [0] : vector<8x16xf32> to vector<16xf32>
    %41 = vector.shape_cast %40 : vector<16xf32> to vector<1x16xf32>
    %cst_13 = arith.constant 8.000000e+00 : f32
    %42 = vector.broadcast %cst_13 : f32 to vector<1x16xf32>
    %43 = arith.divf %41, %42 : vector<1x16xf32>
    %44 = vector.broadcast %43 : vector<1x16xf32> to vector<8x16xf32>
    %45 = arith.subf %39, %44 : vector<8x16xf32>
    %46 = arith.mulf %45, %45 : vector<8x16xf32>
    %cst_14 = arith.constant dense<0.000000e+00> : vector<16xf32>
    %47 = vector.multi_reduction <add>, %46, %cst_14 [0] : vector<8x16xf32> to vector<16xf32>
    %48 = vector.shape_cast %47 : vector<16xf32> to vector<1x16xf32>
    %cst_15 = arith.constant 8.000000e+00 : f32
    %49 = vector.broadcast %cst_15 : f32 to vector<1x16xf32>
    %50 = arith.divf %48, %49 : vector<1x16xf32>
    %51 = vector.broadcast %43 : vector<1x16xf32> to vector<8x16xf32>
    %52 = arith.subf %39, %51 : vector<8x16xf32>
    %cst_16 = arith.constant 9.99999974E-6 : f32
    %53 = vector.broadcast %cst_16 : f32 to vector<1x16xf32>
    %54 = arith.addf %50, %53 : vector<1x16xf32>
    %55 = math.rsqrt %54 : vector<1x16xf32>
    %56 = vector.broadcast %55 : vector<1x16xf32> to vector<8x16xf32>
    %57 = arith.mulf %52, %56 : vector<8x16xf32>
    %58 = vector.extract_strided_slice %0 {offsets = [4, 0], sizes = [1, 16], strides = [1, 1]} : vector<16x64xf32> to vector<1x16xf32>
    %59 = vector.broadcast %58 : vector<1x16xf32> to vector<8x16xf32>
    %60 = arith.mulf %57, %59 : vector<8x16xf32>
    %61 = vector.extract_strided_slice %0 {offsets = [5, 0], sizes = [1, 16], strides = [1, 1]} : vector<16x64xf32> to vector<1x16xf32>
    %62 = vector.broadcast %61 : vector<1x16xf32> to vector<8x16xf32>
    %63 = arith.addf %60, %62 : vector<8x16xf32>
    %cst_17 = arith.constant 0.000000e+00 : f32
    %64 = vector.broadcast %cst_17 : f32 to vector<8x16xf32>
    %65 = arith.maximumf %63, %64 : vector<8x16xf32>
    %c128 = arith.constant 128 : index
    %c0_18 = arith.constant 0 : index
    %66 = vector.load %arg1[%c128, %c0_18] : memref<400x64xf32, #tpu.memory_space<vmem>>, vector<16x32xf32>
    %cst_19 = arith.constant dense<0.000000e+00> : vector<8x32xf32>
    %67 = tpu.matmul %65, %66, %cst_19 {dimension_numbers = #tpu.dot_dimension_numbers<[1], [0], [0], [1], [0, 0, 1, 1], [], []>} : vector<8x16xf32>, vector<16x32xf32>, vector<8x32xf32> -> vector<8x32xf32>
    %68 = vector.extract_strided_slice %0 {offsets = [6, 0], sizes = [1, 32], strides = [1, 1]} : vector<16x64xf32> to vector<1x32xf32>
    %69 = vector.broadcast %68 : vector<1x32xf32> to vector<8x32xf32>
    %70 = arith.addf %67, %69 : vector<8x32xf32>
    %71 = vector.extract_strided_slice %70 {offsets = [0, 0], sizes = [8, 16], strides = [1, 1]} : vector<8x32xf32> to vector<8x16xf32>
    %72 = vector.extract_strided_slice %70 {offsets = [0, 16], sizes = [8, 16], strides = [1, 1]} : vector<8x32xf32> to vector<8x16xf32>
    %cst_20 = arith.constant 5.000000e-01 : f32
    %73 = vector.broadcast %cst_20 : f32 to vector<8x16xf32>
    %74 = arith.mulf %73, %72 : vector<8x16xf32>
    %75 = math.exp %74 : vector<8x16xf32>
    %76 = arith.mulf %3, %75 : vector<8x16xf32>
    %77 = arith.addf %76, %71 : vector<8x16xf32>
    %c192 = arith.constant 192 : index
    %c0_21 = arith.constant 0 : index
    %78 = vector.load %arg1[%c192, %c0_21] : memref<400x64xf32, #tpu.memory_space<vmem>>, vector<16x16xf32>
    %cst_22 = arith.constant dense<0.000000e+00> : vector<8x16xf32>
    %79 = tpu.matmul %77, %78, %cst_22 {dimension_numbers = #tpu.dot_dimension_numbers<[1], [0], [0], [1], [0, 0, 1, 1], [], []>} : vector<8x16xf32>, vector<16x16xf32>, vector<8x16xf32> -> vector<8x16xf32>
    %80 = vector.extract_strided_slice %0 {offsets = [7, 0], sizes = [1, 16], strides = [1, 1]} : vector<16x64xf32> to vector<1x16xf32>
    %81 = vector.broadcast %80 : vector<1x16xf32> to vector<8x16xf32>
    %82 = arith.addf %79, %81 : vector<8x16xf32>
    %cst_23 = arith.constant dense<0.000000e+00> : vector<16xf32>
    %83 = vector.multi_reduction <add>, %82, %cst_23 [0] : vector<8x16xf32> to vector<16xf32>
    %84 = vector.shape_cast %83 : vector<16xf32> to vector<1x16xf32>
    %cst_24 = arith.constant 8.000000e+00 : f32
    %85 = vector.broadcast %cst_24 : f32 to vector<1x16xf32>
    %86 = arith.divf %84, %85 : vector<1x16xf32>
    %87 = vector.broadcast %86 : vector<1x16xf32> to vector<8x16xf32>
    %88 = arith.subf %82, %87 : vector<8x16xf32>
    %89 = arith.mulf %88, %88 : vector<8x16xf32>
    %cst_25 = arith.constant dense<0.000000e+00> : vector<16xf32>
    %90 = vector.multi_reduction <add>, %89, %cst_25 [0] : vector<8x16xf32> to vector<16xf32>
    %91 = vector.shape_cast %90 : vector<16xf32> to vector<1x16xf32>
    %cst_26 = arith.constant 8.000000e+00 : f32
    %92 = vector.broadcast %cst_26 : f32 to vector<1x16xf32>
    %93 = arith.divf %91, %92 : vector<1x16xf32>
    %94 = vector.broadcast %86 : vector<1x16xf32> to vector<8x16xf32>
    %95 = arith.subf %82, %94 : vector<8x16xf32>
    %cst_27 = arith.constant 9.99999974E-6 : f32
    %96 = vector.broadcast %cst_27 : f32 to vector<1x16xf32>
    %97 = arith.addf %93, %96 : vector<1x16xf32>
    %98 = math.rsqrt %97 : vector<1x16xf32>
    %99 = vector.broadcast %98 : vector<1x16xf32> to vector<8x16xf32>
    %100 = arith.mulf %95, %99 : vector<8x16xf32>
    %101 = vector.extract_strided_slice %0 {offsets = [8, 0], sizes = [1, 16], strides = [1, 1]} : vector<16x64xf32> to vector<1x16xf32>
    %102 = vector.broadcast %101 : vector<1x16xf32> to vector<8x16xf32>
    %103 = arith.mulf %100, %102 : vector<8x16xf32>
    %104 = vector.extract_strided_slice %0 {offsets = [9, 0], sizes = [1, 16], strides = [1, 1]} : vector<16x64xf32> to vector<1x16xf32>
    %105 = vector.broadcast %104 : vector<1x16xf32> to vector<8x16xf32>
    %106 = arith.addf %103, %105 : vector<8x16xf32>
    %cst_28 = arith.constant 0.000000e+00 : f32
    %107 = vector.broadcast %cst_28 : f32 to vector<8x16xf32>
    %108 = arith.maximumf %106, %107 : vector<8x16xf32>
    %c256 = arith.constant 256 : index
    %c0_29 = arith.constant 0 : index
    %109 = vector.load %arg1[%c256, %c0_29] : memref<400x64xf32, #tpu.memory_space<vmem>>, vector<16x32xf32>
    %cst_30 = arith.constant dense<0.000000e+00> : vector<8x32xf32>
    %110 = tpu.matmul %108, %109, %cst_30 {dimension_numbers = #tpu.dot_dimension_numbers<[1], [0], [0], [1], [0, 0, 1, 1], [], []>} : vector<8x16xf32>, vector<16x32xf32>, vector<8x32xf32> -> vector<8x32xf32>
    %111 = vector.extract_strided_slice %0 {offsets = [10, 0], sizes = [1, 32], strides = [1, 1]} : vector<16x64xf32> to vector<1x32xf32>
    %112 = vector.broadcast %111 : vector<1x32xf32> to vector<8x32xf32>
    %113 = arith.addf %110, %112 : vector<8x32xf32>
    %cst_31 = arith.constant dense<0.000000e+00> : vector<32xf32>
    %114 = vector.multi_reduction <add>, %113, %cst_31 [0] : vector<8x32xf32> to vector<32xf32>
    %115 = vector.shape_cast %114 : vector<32xf32> to vector<1x32xf32>
    %cst_32 = arith.constant 8.000000e+00 : f32
    %116 = vector.broadcast %cst_32 : f32 to vector<1x32xf32>
    %117 = arith.divf %115, %116 : vector<1x32xf32>
    %118 = vector.broadcast %117 : vector<1x32xf32> to vector<8x32xf32>
    %119 = arith.subf %113, %118 : vector<8x32xf32>
    %120 = arith.mulf %119, %119 : vector<8x32xf32>
    %cst_33 = arith.constant dense<0.000000e+00> : vector<32xf32>
    %121 = vector.multi_reduction <add>, %120, %cst_33 [0] : vector<8x32xf32> to vector<32xf32>
    %122 = vector.shape_cast %121 : vector<32xf32> to vector<1x32xf32>
    %cst_34 = arith.constant 8.000000e+00 : f32
    %123 = vector.broadcast %cst_34 : f32 to vector<1x32xf32>
    %124 = arith.divf %122, %123 : vector<1x32xf32>
    %125 = vector.broadcast %117 : vector<1x32xf32> to vector<8x32xf32>
    %126 = arith.subf %113, %125 : vector<8x32xf32>
    %cst_35 = arith.constant 9.99999974E-6 : f32
    %127 = vector.broadcast %cst_35 : f32 to vector<1x32xf32>
    %128 = arith.addf %124, %127 : vector<1x32xf32>
    %129 = math.rsqrt %128 : vector<1x32xf32>
    %130 = vector.broadcast %129 : vector<1x32xf32> to vector<8x32xf32>
    %131 = arith.mulf %126, %130 : vector<8x32xf32>
    %132 = vector.extract_strided_slice %0 {offsets = [11, 0], sizes = [1, 32], strides = [1, 1]} : vector<16x64xf32> to vector<1x32xf32>
    %133 = vector.broadcast %132 : vector<1x32xf32> to vector<8x32xf32>
    %134 = arith.mulf %131, %133 : vector<8x32xf32>
    %135 = vector.extract_strided_slice %0 {offsets = [12, 0], sizes = [1, 32], strides = [1, 1]} : vector<16x64xf32> to vector<1x32xf32>
    %136 = vector.broadcast %135 : vector<1x32xf32> to vector<8x32xf32>
    %137 = arith.addf %134, %136 : vector<8x32xf32>
    %cst_36 = arith.constant 0.000000e+00 : f32
    %138 = vector.broadcast %cst_36 : f32 to vector<8x32xf32>
    %139 = arith.maximumf %137, %138 : vector<8x32xf32>
    %c320 = arith.constant 320 : index
    %c0_37 = arith.constant 0 : index
    %140 = vector.load %arg1[%c320, %c0_37] : memref<400x64xf32, #tpu.memory_space<vmem>>, vector<32x64xf32>
    %cst_38 = arith.constant dense<0.000000e+00> : vector<8x64xf32>
    %141 = tpu.matmul %139, %140, %cst_38 {dimension_numbers = #tpu.dot_dimension_numbers<[1], [0], [0], [1], [0, 0, 1, 1], [], []>} : vector<8x32xf32>, vector<32x64xf32>, vector<8x64xf32> -> vector<8x64xf32>
    %142 = vector.extract_strided_slice %0 {offsets = [13, 0], sizes = [1, 64], strides = [1, 1]} : vector<16x64xf32> to vector<1x64xf32>
    %143 = vector.broadcast %142 : vector<1x64xf32> to vector<8x64xf32>
    %144 = arith.addf %141, %143 : vector<8x64xf32>
    %cst_39 = arith.constant dense<0.000000e+00> : vector<64xf32>
    %145 = vector.multi_reduction <add>, %144, %cst_39 [0] : vector<8x64xf32> to vector<64xf32>
    %146 = vector.shape_cast %145 : vector<64xf32> to vector<1x64xf32>
    %cst_40 = arith.constant 8.000000e+00 : f32
    %147 = vector.broadcast %cst_40 : f32 to vector<1x64xf32>
    %148 = arith.divf %146, %147 : vector<1x64xf32>
    %149 = vector.broadcast %148 : vector<1x64xf32> to vector<8x64xf32>
    %150 = arith.subf %144, %149 : vector<8x64xf32>
    %151 = arith.mulf %150, %150 : vector<8x64xf32>
    %cst_41 = arith.constant dense<0.000000e+00> : vector<64xf32>
    %152 = vector.multi_reduction <add>, %151, %cst_41 [0] : vector<8x64xf32> to vector<64xf32>
    %153 = vector.shape_cast %152 : vector<64xf32> to vector<1x64xf32>
    %cst_42 = arith.constant 8.000000e+00 : f32
    %154 = vector.broadcast %cst_42 : f32 to vector<1x64xf32>
    %155 = arith.divf %153, %154 : vector<1x64xf32>
    %156 = vector.broadcast %148 : vector<1x64xf32> to vector<8x64xf32>
    %157 = arith.subf %144, %156 : vector<8x64xf32>
    %cst_43 = arith.constant 9.99999974E-6 : f32
    %158 = vector.broadcast %cst_43 : f32 to vector<1x64xf32>
    %159 = arith.addf %155, %158 : vector<1x64xf32>
    %160 = math.rsqrt %159 : vector<1x64xf32>
    %161 = vector.broadcast %160 : vector<1x64xf32> to vector<8x64xf32>
    %162 = arith.mulf %157, %161 : vector<8x64xf32>
    %163 = vector.extract_strided_slice %0 {offsets = [14, 0], sizes = [1, 64], strides = [1, 1]} : vector<16x64xf32> to vector<1x64xf32>
    %164 = vector.broadcast %163 : vector<1x64xf32> to vector<8x64xf32>
    %165 = arith.mulf %162, %164 : vector<8x64xf32>
    %166 = vector.extract_strided_slice %0 {offsets = [15, 0], sizes = [1, 64], strides = [1, 1]} : vector<16x64xf32> to vector<1x64xf32>
    %167 = vector.broadcast %166 : vector<1x64xf32> to vector<8x64xf32>
    %168 = arith.addf %165, %167 : vector<8x64xf32>
    %cst_44 = arith.constant 0.000000e+00 : f32
    %169 = vector.broadcast %cst_44 : f32 to vector<8x32xf32>
    %170 = tpu.concatenate %168, %70, %169 in 1 : vector<8x64xf32>, vector<8x32xf32>, vector<8x32xf32> -> vector<8x128xf32>
    %c0_45 = arith.constant 0 : index
    %c0_46 = arith.constant 0 : index
    %171 = vector.load %arg2[%c0_45, %c0_46] : memref<8x128xf32, #tpu.memory_space<vmem>>, vector<8x128xf32>
    tpu.vector_store %arg2[%c0_45, %c0_46], %170 {strides = array<i32>} : memref<8x128xf32, #tpu.memory_space<vmem>>, vector<8x128xf32>,
    return
  }
}

</mosaic_0001>

<llo_original>
// kernel: vae_forward.1
$region0: #{vae_forward.1}
  #allocation0 [shape = 'u32[]', space=smem, size = 0x4, offset = 0x4, fixed_abs, tag = 'smem constant byte address 0x4 - core index']
  #allocation1 [shape = 'u32[144,128]{1,0:T(1,128)}', space=vmem, size = 0x12000, scoped, tag = 'internal scratch']
  %s0 = inlined_call_operand.vmem [shape: f32[8,128], index: 0, kind: input, shape index: {}]
  %s1 = inlined_call_operand.vmem [shape: f32[400,64], index: 1, kind: input, shape index: {}]
  %s2 = inlined_call_operand.vmem [shape: f32[8,128], index: 2, kind: output, shape index: {}]
  %s3 = sld [smem:[#allocation0]]
  $region18: #{vae_forward.1} parent=0
    _
  %s5 = ssub.s32 1, %s3
  %s6 = scalar_select 0, %s5, %s3
  // Predicated region
  $region2: #{vae_forward.1} parent=0 // pred_check
    _
  $region3: #{vae_forward.1} parent=0 // pred_check_branch
    %8 = sbr.rel (0) target = $region5
  $region4: #{vae_forward.1} parent=0 // pred_region
    _
  $region5: #{vae_forward.1} parent=0 // pred_fallthru
    _
  // Predicated region
  $region6: #{vae_forward.1} parent=0 // pred_check
    _
  $region7: #{vae_forward.1} parent=0 // pred_check_branch
    %10 = sbr.rel (0) target = $region9
  $region8: #{vae_forward.1} parent=0 // pred_region
    _
  $region9: #{vae_forward.1} parent=0 // pred_fallthru
    _
  %v11 = vld [vmem:[%s1 + $0x180] sm:$0xff]
  %v12 = vld [vmem:[%s1 + $0x188] sm:$0xff]
  %v13 = vld [vmem:[%s0] sm:$0xff]
  %v14 = vld [vmem:[%s1] sm:$0xff]
  %v15 = vld [vmem:[%s1 + $0x8] sm:$0xff]
  %v16 = vld [vmem:[%s1 + $0x10] sm:$0xff]
  %v17 = vld [vmem:[%s1 + $0x18] sm:$0xff]
  %v18 = vld [vmem:[%s1 + $0x20] sm:$0xff]
  %v19 = vld [vmem:[%s1 + $0x28] sm:$0xff]
  %v20 = vld [vmem:[%s1 + $0x30] sm:$0xff]
  %v21 = vld [vmem:[%s1 + $0x38] sm:$0xff]
  %v22 = vlaneseq
  %v23 = vshrl.u32 %v22, 7
  %v24 = vsub.s32 0, %v23
  %v25 = vrot.slane %v11, %v24
  %vm26 = vcmask 523264
  %v28 = vsel %vm26, %v13, 0
  %30 = vmatprep.subr.mxu0 0.0
  %31 = vmatpush1.msra.mxu0 %v14
  %32 = vmatprep.subr.mxu0 0.0
  %33 = vmatpush1.msra.mxu0 %v15
  %34 = vmatprep.subr.mxu0 0.0
  %35 = vmatpush1.msra.mxu0 %v16
  %36 = vmatprep.subr.mxu0 0.0
  %37 = vmatpush1.msra.mxu0 %v17
  %38 = vmatprep.subr.mxu0 0.0
  %39 = vmatpush1.msra.mxu0 %v18
  %40 = vmatprep.subr.mxu0 0.0
  %41 = vmatpush1.msra.mxu0 %v19
  %42 = vmatprep.subr.mxu0 0.0
  %43 = vmatpush1.msra.mxu0 %v20
  %44 = vmatprep.subr.mxu0 0.0
  %45 = vmatpush1.msra.mxu0 %v21
  %46 = vmatprep.subr.mxu0 0.0
  %47 = vmatpush1.msra.mxu0 0.0
  %48 = vmatprep.subr.mxu0 0.0
  %49 = vmatpush1.msra.mxu0 0.0
  %50 = vmatprep.subr.mxu0 0.0
  %51 = vmatpush1.msra.mxu0 0.0
  %52 = vmatprep.subr.mxu0 0.0
  %53 = vmatpush1.msra.mxu0 0.0
  %54 = vmatprep.subr.mxu0 0.0
  %55 = vmatpush1.msra.mxu0 0.0
  %56 = vmatprep.subr.mxu0 0.0
  %57 = vmatpush1.msra.mxu0 0.0
  %58 = vmatprep.subr.mxu0 0.0
  %59 = vmatpush1.msra.mxu0 0.0
  %60 = vmatprep.subr.mxu0 0.0
  %61 = vmatpush1.msra.mxu0 0.0
  %62 = vmatprep.subr.mxu0 0.0
  %63 = vmatpush1.msra.mxu0 0.0
  %64 = vmatprep.subr.mxu0 0.0
  %65 = vmatpush1.msra.mxu0 0.0
  %66 = vmatprep.subr.mxu0 0.0
  %67 = vmatpush1.msra.mxu0 0.0
  %68 = vmatprep.subr.mxu0 0.0
  %69 = vmatpush1.msra.mxu0 0.0
  %70 = vmatprep.subr.mxu0 0.0
  %71 = vmatpush1.msra.mxu0 0.0
  %72 = vmatprep.subr.mxu0 0.0
  %73 = vmatpush1.msra.mxu0 0.0
  %74 = vmatprep.subr.mxu0 0.0
  %75 = vmatpush1.msra.mxu0 0.0
  %76 = vmatprep.subr.mxu0 0.0
  %77 = vmatpush1.msra.mxu0 0.0
  %78 = vmatprep.subr.mxu0 0.0
  %79 = vmatpush1.msra.mxu0 0.0
  %80 = vmatprep.subr.mxu0 0.0
  %81 = vmatpush1.msra.mxu0 0.0
  %82 = vmatprep.subr.mxu0 0.0
  %83 = vmatpush1.msra.mxu0 0.0
  %84 = vmatprep.subr.mxu0 0.0
  %85 = vmatpush1.msra.mxu0 0.0
  %86 = vmatprep.subr.mxu0 0.0
  %87 = vmatpush1.msra.mxu0 0.0
  %88 = vmatprep.subr.mxu0 0.0
  %89 = vmatpush1.msra.mxu0 0.0
  %90 = vmatprep.subr.mxu0 0.0
  %91 = vmatpush1.msra.mxu0 0.0
  %92 = vmatprep.subr.mxu0 0.0
  %93 = vmatpush1.msra.mxu0 0.0
  %94 = vmatprep.mubr.f32.mxu0 0.0
  %95 = vmatmul.mubr.f32.gmra.mrb[0].mxu0 %v28
  %v96 = vpop.f32.mrb[0].mxu0
  %v97 = vadd.f32 %v25, %v96
  %v98 = vpop.f32.mrb[0].mxu0
  %99 = vdwg.mxu0
  %vm100 = vcmask 261120
  %v101 = vsel %vm100, %v97, 0.0
  %v102 = vrot.slane %v101, 4
  %v103 = vadd.f32 %v101, %v102
  %v104 = vrot.slane %v103, 2
  %v105 = vadd.f32 %v103, %v104
  %v106 = vrot.slane %v105, 1
  %v107 = vadd.f32 %v105, %v106
  %v108 = vrcp.pop 8.0
  %v109 = vmul.f32 %v107, %v108
  %v110 = vsub.f32 %v97, %v109
  %v111 = vmul.f32 %v110, %v110
  %v112 = vsel %vm100, %v111, 0.0
  %v113 = vrot.slane %v112, 4
  %v114 = vadd.f32 %v112, %v113
  %v115 = vrot.slane %v114, 2
  %v116 = vadd.f32 %v114, %v115
  %v117 = vrot.slane %v116, 1
  %v118 = vadd.f32 %v116, %v117
  %v119 = vmul.f32 %v118, %v108
  %v120 = vadd.f32 %v119, 1e-05
  %v121 = vrsqrt.pop %v120
  %v122 = vmul.f32 %v110, %v121
  %v123 = vlaneseq
  %v124 = vshrl.u32 %v123, 7
  %v125 = vsub.s32 1, %v124
  %v126 = vrot.slane %v11, %v125
  %v127 = vmul.f32 %v122, %v126
  %v128 = vlaneseq
  %v129 = vshrl.u32 %v128, 7
  %v130 = vsub.s32 2, %v129
  %v131 = vrot.slane %v11, %v130
  %v132 = vadd.f32 %v127, %v131
  %v133 = vmax.f32 %v132, 0.0
  %v134 = vld [vmem:[%s1 + $0x40] sm:$0xff]
  %v135 = vld [vmem:[%s1 + $0x48] sm:$0xff]
  %v136 = vld [vmem:[%s1 + $0x50] sm:$0xff]
  %v137 = vld [vmem:[%s1 + $0x58] sm:$0xff]
  %v138 = vlaneseq
  %v139 = vshrl.u32 %v138, 7
  %v140 = vsub.s32 3, %v139
  %v141 = vrot.slane %v11, %v140
  %v143 = vsel %vm100, %v133, 0
  %145 = vmatprep.subr.mxu0 0.0
  %146 = vmatpush1.msra.mxu0 %v134
  %147 = vmatprep.subr.mxu0 0.0
  %148 = vmatpush1.msra.mxu0 %v135
  %149 = vmatprep.subr.mxu0 0.0
  %150 = vmatpush1.msra.mxu0 %v136
  %151 = vmatprep.subr.mxu0 0.0
  %152 = vmatpush1.msra.mxu0 %v137
  %153 = vmatprep.subr.mxu0 0.0
  %154 = vmatpush1.msra.mxu0 0.0
  %155 = vmatprep.subr.mxu0 0.0
  %156 = vmatpush1.msra.mxu0 0.0
  %157 = vmatprep.subr.mxu0 0.0
  %158 = vmatpush1.msra.mxu0 0.0
  %159 = vmatprep.subr.mxu0 0.0
  %160 = vmatpush1.msra.mxu0 0.0
  %161 = vmatprep.subr.mxu0 0.0
  %162 = vmatpush1.msra.mxu0 0.0
  %163 = vmatprep.subr.mxu0 0.0
  %164 = vmatpush1.msra.mxu0 0.0
  %165 = vmatprep.subr.mxu0 0.0
  %166 = vmatpush1.msra.mxu0 0.0
  %167 = vmatprep.subr.mxu0 0.0
  %168 = vmatpush1.msra.mxu0 0.0
  %169 = vmatprep.subr.mxu0 0.0
  %170 = vmatpush1.msra.mxu0 0.0
  %171 = vmatprep.subr.mxu0 0.0
  %172 = vmatpush1.msra.mxu0 0.0
  %173 = vmatprep.subr.mxu0 0.0
  %174 = vmatpush1.msra.mxu0 0.0
  %175 = vmatprep.subr.mxu0 0.0
  %176 = vmatpush1.msra.mxu0 0.0
  %177 = vmatprep.subr.mxu0 0.0
  %178 = vmatpush1.msra.mxu0 0.0
  %179 = vmatprep.subr.mxu0 0.0
  %180 = vmatpush1.msra.mxu0 0.0
  %181 = vmatprep.subr.mxu0 0.0
  %182 = vmatpush1.msra.mxu0 0.0
  %183 = vmatprep.subr.mxu0 0.0
  %184 = vmatpush1.msra.mxu0 0.0
  %185 = vmatprep.subr.mxu0 0.0
  %186 = vmatpush1.msra.mxu0 0.0
  %187 = vmatprep.subr.mxu0 0.0
  %188 = vmatpush1.msra.mxu0 0.0
  %189 = vmatprep.subr.mxu0 0.0
  %190 = vmatpush1.msra.mxu0 0.0
  %191 = vmatprep.subr.mxu0 0.0
  %192 = vmatpush1.msra.mxu0 0.0
  %193 = vmatprep.subr.mxu0 0.0
  %194 = vmatpush1.msra.mxu0 0.0
  %195 = vmatprep.subr.mxu0 0.0
  %196 = vmatpush1.msra.mxu0 0.0
  %197 = vmatprep.subr.mxu0 0.0
  %198 = vmatpush1.msra.mxu0 0.0
  %199 = vmatprep.subr.mxu0 0.0
  %200 = vmatpush1.msra.mxu0 0.0
  %201 = vmatprep.subr.mxu0 0.0
  %202 = vmatpush1.msra.mxu0 0.0
  %203 = vmatprep.subr.mxu0 0.0
  %204 = vmatpush1.msra.mxu0 0.0
  %205 = vmatprep.subr.mxu0 0.0
  %206 = vmatpush1.msra.mxu0 0.0
  %207 = vmatprep.subr.mxu0 0.0
  %208 = vmatpush1.msra.mxu0 0.0
  %209 = vmatprep.mubr.f32.mxu0 0.0
  %210 = vmatmul.mubr.f32.gmra.mrb[0].mxu0 %v143
  %v211 = vpop.f32.mrb[0].mxu0
  %v212 = vadd.f32 %v141, %v211
  %v213 = vpop.f32.mrb[0].mxu0
  %214 = vdwg.mxu0
  %vm215 = vcmask 130048
  %v216 = vsel %vm215, %v212, 0.0
  %v217 = vrot.slane %v216, 4
  %v218 = vadd.f32 %v216, %v217
  %v219 = vrot.slane %v218, 2
  %v220 = vadd.f32 %v218, %v219
  %v221 = vrot.slane %v220, 1
  %v222 = vadd.f32 %v220, %v221
  %v223 = vmul.f32 %v222, %v108
  %v224 = vsub.f32 %v212, %v223
  %v225 = vmul.f32 %v224, %v224
  %v226 = vsel %vm215, %v225, 0.0
  %v227 = vrot.slane %v226, 4
  %v228 = vadd.f32 %v226, %v227
  %v229 = vrot.slane %v228, 2
  %v230 = vadd.f32 %v228, %v229
  %v231 = vrot.slane %v230, 1
  %v232 = vadd.f32 %v230, %v231
  %v233 = vmul.f32 %v232, %v108
  %v234 = vadd.f32 %v233, 1e-05
  %v235 = vrsqrt.pop %v234
  %v236 = vmul.f32 %v224, %v235
  %v237 = vlaneseq
  %v238 = vshrl.u32 %v237, 7
  %v239 = vsub.s32 4, %v238
  %v240 = vrot.slane %v11, %v239
  %v241 = vmul.f32 %v236, %v240
  %v242 = vlaneseq
  %v243 = vshrl.u32 %v242, 7
  %v244 = vsub.s32 5, %v243
  %v245 = vrot.slane %v11, %v244
  %v246 = vadd.f32 %v241, %v245
  %v247 = vmax.f32 %v246, 0.0
  %v248 = vld [vmem:[%s1 + $0x80] sm:$0xff]
  %v249 = vld [vmem:[%s1 + $0x88] sm:$0xff]
  %v250 = vlaneseq
  %v251 = vshrl.u32 %v250, 7
  %v252 = vsub.s32 6, %v251
  %v253 = vrot.slane %v11, %v252
  %v255 = vsel %vm215, %v247, 0
  %257 = vmatprep.subr.mxu0 0.0
  %258 = vmatpush1.msra.mxu0 %v248
  %259 = vmatprep.subr.mxu0 0.0
  %260 = vmatpush1.msra.mxu0 %v249
  %261 = vmatprep.subr.mxu0 0.0
  %262 = vmatpush1.msra.mxu0 0.0
  %263 = vmatprep.subr.mxu0 0.0
  %264 = vmatpush1.msra.mxu0 0.0
  %265 = vmatprep.subr.mxu0 0.0
  %266 = vmatpush1.msra.mxu0 0.0
  %267 = vmatprep.subr.mxu0 0.0
  %268 = vmatpush1.msra.mxu0 0.0
  %269 = vmatprep.subr.mxu0 0.0
  %270 = vmatpush1.msra.mxu0 0.0
  %271 = vmatprep.subr.mxu0 0.0
  %272 = vmatpush1.msra.mxu0 0.0
  %273 = vmatprep.subr.mxu0 0.0
  %274 = vmatpush1.msra.mxu0 0.0
  %275 = vmatprep.subr.mxu0 0.0
  %276 = vmatpush1.msra.mxu0 0.0
  %277 = vmatprep.subr.mxu0 0.0
  %278 = vmatpush1.msra.mxu0 0.0
  %279 = vmatprep.subr.mxu0 0.0
  %280 = vmatpush1.msra.mxu0 0.0
  %281 = vmatprep.subr.mxu0 0.0
  %282 = vmatpush1.msra.mxu0 0.0
  %283 = vmatprep.subr.mxu0 0.0
  %284 = vmatpush1.msra.mxu0 0.0
  %285 = vmatprep.subr.mxu0 0.0
  %286 = vmatpush1.msra.mxu0 0.0
  %287 = vmatprep.subr.mxu0 0.0
  %288 = vmatpush1.msra.mxu0 0.0
  %289 = vmatprep.subr.mxu0 0.0
  %290 = vmatpush1.msra.mxu0 0.0
  %291 = vmatprep.subr.mxu0 0.0
  %292 = vmatpush1.msra.mxu0 0.0
  %293 = vmatprep.subr.mxu0 0.0
  %294 = vmatpush1.msra.mxu0 0.0
  %295 = vmatprep.subr.mxu0 0.0
  %296 = vmatpush1.msra.mxu0 0.0
  %297 = vmatprep.subr.mxu0 0.0
  %298 = vmatpush1.msra.mxu0 0.0
  %299 = vmatprep.subr.mxu0 0.0
  %300 = vmatpush1.msra.mxu0 0.0
  %301 = vmatprep.subr.mxu0 0.0
  %302 = vmatpush1.msra.mxu0 0.0
  %303 = vmatprep.subr.mxu0 0.0
  %304 = vmatpush1.msra.mxu0 0.0
  %305 = vmatprep.subr.mxu0 0.0
  %306 = vmatpush1.msra.mxu0 0.0
  %307 = vmatprep.subr.mxu0 0.0
  %308 = vmatpush1.msra.mxu0 0.0
  %309 = vmatprep.subr.mxu0 0.0
  %310 = vmatpush1.msra.mxu0 0.0
  %311 = vmatprep.subr.mxu0 0.0
  %312 = vmatpush1.msra.mxu0 0.0
  %313 = vmatprep.subr.mxu0 0.0
  %314 = vmatpush1.msra.mxu0 0.0
  %315 = vmatprep.subr.mxu0 0.0
  %316 = vmatpush1.msra.mxu0 0.0
  %317 = vmatprep.subr.mxu0 0.0
  %318 = vmatpush1.msra.mxu0 0.0
  %319 = vmatprep.subr.mxu0 0.0
  %320 = vmatpush1.msra.mxu0 0.0
  %321 = vmatprep.mubr.f32.mxu0 0.0
  %322 = vmatmul.mubr.f32.gmra.mrb[0].mxu0 %v255
  %v323 = vpop.f32.mrb[0].mxu0
  %v324 = vadd.f32 %v253, %v323
  %v325 = vpop.f32.mrb[0].mxu0
  %326 = vdwg.mxu0
  %v327 = vmul.f32 %v324, 0.5
  %v328 = vmul.f32 %v327, 1.442695
  %v329 = vpow.pop %v328
  %331 = vrot.lane.b32.xlu0 %v329, 48
  %v332 = vpop.permute.xlu0 %331
  %v334 = vmul.f32 %v13, %v332
  %336 = vrot.lane.b32.xlu0 %v324, 64
  %v337 = vpop.permute.xlu0 %336
  %v339 = vadd.f32 %v334, %v337
  %v340 = vld [vmem:[%s1 + $0xc0] sm:$0xff]
  %v341 = vld [vmem:[%s1 + $0xc8] sm:$0xff]
  %v342 = vlaneseq
  %v343 = vshrl.u32 %v342, 7
  %v344 = vsub.s32 7, %v343
  %v345 = vrot.slane %v11, %v344
  %347 = vrot.lane.b32.xlu0 %v339, 64
  %v348 = vpop.permute.xlu0 %347
  %v349 = vsel %vm215, %v348, 0
  %351 = vmatprep.subr.mxu0 0.0
  %352 = vmatpush1.msra.mxu0 %v340
  %353 = vmatprep.subr.mxu0 0.0
  %354 = vmatpush1.msra.mxu0 %v341
  %355 = vmatprep.subr.mxu0 0.0
  %356 = vmatpush1.msra.mxu0 0.0
  %357 = vmatprep.subr.mxu0 0.0
  %358 = vmatpush1.msra.mxu0 0.0
  %359 = vmatprep.subr.mxu0 0.0
  %360 = vmatpush1.msra.mxu0 0.0
  %361 = vmatprep.subr.mxu0 0.0
  %362 = vmatpush1.msra.mxu0 0.0
  %363 = vmatprep.subr.mxu0 0.0
  %364 = vmatpush1.msra.mxu0 0.0
  %365 = vmatprep.subr.mxu0 0.0
  %366 = vmatpush1.msra.mxu0 0.0
  %367 = vmatprep.subr.mxu0 0.0
  %368 = vmatpush1.msra.mxu0 0.0
  %369 = vmatprep.subr.mxu0 0.0
  %370 = vmatpush1.msra.mxu0 0.0
  %371 = vmatprep.subr.mxu0 0.0
  %372 = vmatpush1.msra.mxu0 0.0
  %373 = vmatprep.subr.mxu0 0.0
  %374 = vmatpush1.msra.mxu0 0.0
  %375 = vmatprep.subr.mxu0 0.0
  %376 = vmatpush1.msra.mxu0 0.0
  %377 = vmatprep.subr.mxu0 0.0
  %378 = vmatpush1.msra.mxu0 0.0
  %379 = vmatprep.subr.mxu0 0.0
  %380 = vmatpush1.msra.mxu0 0.0
  %381 = vmatprep.subr.mxu0 0.0
  %382 = vmatpush1.msra.mxu0 0.0
  %383 = vmatprep.subr.mxu0 0.0
  %384 = vmatpush1.msra.mxu0 0.0
  %385 = vmatprep.subr.mxu0 0.0
  %386 = vmatpush1.msra.mxu0 0.0
  %387 = vmatprep.subr.mxu0 0.0
  %388 = vmatpush1.msra.mxu0 0.0
  %389 = vmatprep.subr.mxu0 0.0
  %390 = vmatpush1.msra.mxu0 0.0
  %391 = vmatprep.subr.mxu0 0.0
  %392 = vmatpush1.msra.mxu0 0.0
  %393 = vmatprep.subr.mxu0 0.0
  %394 = vmatpush1.msra.mxu0 0.0
  %395 = vmatprep.subr.mxu0 0.0
  %396 = vmatpush1.msra.mxu0 0.0
  %397 = vmatprep.subr.mxu0 0.0
  %398 = vmatpush1.msra.mxu0 0.0
  %399 = vmatprep.subr.mxu0 0.0
  %400 = vmatpush1.msra.mxu0 0.0
  %401 = vmatprep.subr.mxu0 0.0
  %402 = vmatpush1.msra.mxu0 0.0
  %403 = vmatprep.subr.mxu0 0.0
  %404 = vmatpush1.msra.mxu0 0.0
  %405 = vmatprep.subr.mxu0 0.0
  %406 = vmatpush1.msra.mxu0 0.0
  %407 = vmatprep.subr.mxu0 0.0
  %408 = vmatpush1.msra.mxu0 0.0
  %409 = vmatprep.subr.mxu0 0.0
  %410 = vmatpush1.msra.mxu0 0.0
  %411 = vmatprep.subr.mxu0 0.0
  %412 = vmatpush1.msra.mxu0 0.0
  %413 = vmatprep.subr.mxu0 0.0
  %414 = vmatpush1.msra.mxu0 0.0
  %415 = vmatprep.mubr.f32.mxu0 0.0
  %416 = vmatmul.mubr.f32.gmra.mrb[0].mxu0 %v349
  %v417 = vpop.f32.mrb[0].mxu0
  %v418 = vadd.f32 %v345, %v417
  %v419 = vpop.f32.mrb[0].mxu0
  %420 = vdwg.mxu0
  %v421 = vsel %vm215, %v418, 0.0
  %v422 = vrot.slane %v421, 4
  %v423 = vadd.f32 %v421, %v422
  %v424 = vrot.slane %v423, 2
  %v425 = vadd.f32 %v423, %v424
  %v426 = vrot.slane %v425, 1
  %v427 = vadd.f32 %v425, %v426
  %v428 = vmul.f32 %v427, %v108
  %v429 = vsub.f32 %v418, %v428
  %v430 = vmul.f32 %v429, %v429
  %v431 = vsel %vm215, %v430, 0.0
  %v432 = vrot.slane %v431, 4
  %v433 = vadd.f32 %v431, %v432
  %v434 = vrot.slane %v433, 2
  %v435 = vadd.f32 %v433, %v434
  %v436 = vrot.slane %v435, 1
  %v437 = vadd.f32 %v435, %v436
  %v438 = vmul.f32 %v437, %v108
  %v439 = vadd.f32 %v438, 1e-05
  %v440 = vrsqrt.pop %v439
  %v441 = vmul.f32 %v429, %v440
  %v442 = vlaneseq
  %v443 = vshrl.u32 %v442, 7
  %v444 = vsub.s32 0, %v443
  %v445 = vrot.slane %v12, %v444
  %v446 = vmul.f32 %v441, %v445
  %v447 = vlaneseq
  %v448 = vshrl.u32 %v447, 7
  %v449 = vsub.s32 1, %v448
  %v450 = vrot.slane %v12, %v449
  %v451 = vadd.f32 %v446, %v450
  %v452 = vmax.f32 %v451, 0.0
  %v453 = vld [vmem:[%s1 + $0x100] sm:$0xff]
  %v454 = vld [vmem:[%s1 + $0x108] sm:$0xff]
  %v455 = vlaneseq
  %v456 = vshrl.u32 %v455, 7
  %v457 = vsub.s32 2, %v456
  %v458 = vrot.slane %v12, %v457
  %v460 = vsel %vm215, %v452, 0
  %462 = vmatprep.subr.mxu0 0.0
  %463 = vmatpush1.msra.mxu0 %v453
  %464 = vmatprep.subr.mxu0 0.0
  %465 = vmatpush1.msra.mxu0 %v454
  %466 = vmatprep.subr.mxu0 0.0
  %467 = vmatpush1.msra.mxu0 0.0
  %468 = vmatprep.subr.mxu0 0.0
  %469 = vmatpush1.msra.mxu0 0.0
  %470 = vmatprep.subr.mxu0 0.0
  %471 = vmatpush1.msra.mxu0 0.0
  %472 = vmatprep.subr.mxu0 0.0
  %473 = vmatpush1.msra.mxu0 0.0
  %474 = vmatprep.subr.mxu0 0.0
  %475 = vmatpush1.msra.mxu0 0.0
  %476 = vmatprep.subr.mxu0 0.0
  %477 = vmatpush1.msra.mxu0 0.0
  %478 = vmatprep.subr.mxu0 0.0
  %479 = vmatpush1.msra.mxu0 0.0
  %480 = vmatprep.subr.mxu0 0.0
  %481 = vmatpush1.msra.mxu0 0.0
  %482 = vmatprep.subr.mxu0 0.0
  %483 = vmatpush1.msra.mxu0 0.0
  %484 = vmatprep.subr.mxu0 0.0
  %485 = vmatpush1.msra.mxu0 0.0
  %486 = vmatprep.subr.mxu0 0.0
  %487 = vmatpush1.msra.mxu0 0.0
  %488 = vmatprep.subr.mxu0 0.0
  %489 = vmatpush1.msra.mxu0 0.0
  %490 = vmatprep.subr.mxu0 0.0
  %491 = vmatpush1.msra.mxu0 0.0
  %492 = vmatprep.subr.mxu0 0.0
  %493 = vmatpush1.msra.mxu0 0.0
  %494 = vmatprep.subr.mxu0 0.0
  %495 = vmatpush1.msra.mxu0 0.0
  %496 = vmatprep.subr.mxu0 0.0
  %497 = vmatpush1.msra.mxu0 0.0
  %498 = vmatprep.subr.mxu0 0.0
  %499 = vmatpush1.msra.mxu0 0.0
  %500 = vmatprep.subr.mxu0 0.0
  %501 = vmatpush1.msra.mxu0 0.0
  %502 = vmatprep.subr.mxu0 0.0
  %503 = vmatpush1.msra.mxu0 0.0
  %504 = vmatprep.subr.mxu0 0.0
  %505 = vmatpush1.msra.mxu0 0.0
  %506 = vmatprep.subr.mxu0 0.0
  %507 = vmatpush1.msra.mxu0 0.0
  %508 = vmatprep.subr.mxu0 0.0
  %509 = vmatpush1.msra.mxu0 0.0
  %510 = vmatprep.subr.mxu0 0.0
  %511 = vmatpush1.msra.mxu0 0.0
  %512 = vmatprep.subr.mxu0 0.0
  %513 = vmatpush1.msra.mxu0 0.0
  %514 = vmatprep.subr.mxu0 0.0
  %515 = vmatpush1.msra.mxu0 0.0
  %516 = vmatprep.subr.mxu0 0.0
  %517 = vmatpush1.msra.mxu0 0.0
  %518 = vmatprep.subr.mxu0 0.0
  %519 = vmatpush1.msra.mxu0 0.0
  %520 = vmatprep.subr.mxu0 0.0
  %521 = vmatpush1.msra.mxu0 0.0
  %522 = vmatprep.subr.mxu0 0.0
  %523 = vmatpush1.msra.mxu0 0.0
  %524 = vmatprep.subr.mxu0 0.0
  %525 = vmatpush1.msra.mxu0 0.0
  %526 = vmatprep.mubr.f32.mxu0 0.0
  %527 = vmatmul.mubr.f32.gmra.mrb[0].mxu0 %v460
  %v528 = vpop.f32.mrb[0].mxu0
  %v529 = vadd.f32 %v458, %v528
  %v530 = vpop.f32.mrb[0].mxu0
  %531 = vdwg.mxu0
  %v532 = vsel %vm100, %v529, 0.0
  %v533 = vrot.slane %v532, 4
  %v534 = vadd.f32 %v532, %v533
  %v535 = vrot.slane %v534, 2
  %v536 = vadd.f32 %v534, %v535
  %v537 = vrot.slane %v536, 1
  %v538 = vadd.f32 %v536, %v537
  %v539 = vmul.f32 %v538, %v108
  %v540 = vsub.f32 %v529, %v539
  %v541 = vmul.f32 %v540, %v540
  %v542 = vsel %vm100, %v541, 0.0
  %v543 = vrot.slane %v542, 4
  %v544 = vadd.f32 %v542, %v543
  %v545 = vrot.slane %v544, 2
  %v546 = vadd.f32 %v544, %v545
  %v547 = vrot.slane %v546, 1
  %v548 = vadd.f32 %v546, %v547
  %v549 = vmul.f32 %v548, %v108
  %v550 = vadd.f32 %v549, 1e-05
  %v551 = vrsqrt.pop %v550
  %v552 = vmul.f32 %v540, %v551
  %v553 = vlaneseq
  %v554 = vshrl.u32 %v553, 7
  %v555 = vsub.s32 3, %v554
  %v556 = vrot.slane %v12, %v555
  %v557 = vmul.f32 %v552, %v556
  %v558 = vlaneseq
  %v559 = vshrl.u32 %v558, 7
  %v560 = vsub.s32 4, %v559
  %v561 = vrot.slane %v12, %v560
  %v562 = vadd.f32 %v557, %v561
  %v563 = vmax.f32 %v562, 0.0
  %v564 = vld [vmem:[%s1 + $0x140] sm:$0xff]
  %v565 = vld [vmem:[%s1 + $0x148] sm:$0xff]
  %v566 = vld [vmem:[%s1 + $0x150] sm:$0xff]
  %v567 = vld [vmem:[%s1 + $0x158] sm:$0xff]
  %v568 = vlaneseq
  %v569 = vshrl.u32 %v568, 7
  %v570 = vsub.s32 5, %v569
  %v571 = vrot.slane %v12, %v570
  %v573 = vsel %vm100, %v563, 0
  %575 = vmatprep.subr.mxu0 0.0
  %576 = vmatpush1.msra.mxu0 %v564
  %577 = vmatprep.subr.mxu0 0.0
  %578 = vmatpush1.msra.mxu0 %v565
  %579 = vmatprep.subr.mxu0 0.0
  %580 = vmatpush1.msra.mxu0 %v566
  %581 = vmatprep.subr.mxu0 0.0
  %582 = vmatpush1.msra.mxu0 %v567
  %583 = vmatprep.subr.mxu0 0.0
  %584 = vmatpush1.msra.mxu0 0.0
  %585 = vmatprep.subr.mxu0 0.0
  %586 = vmatpush1.msra.mxu0 0.0
  %587 = vmatprep.subr.mxu0 0.0
  %588 = vmatpush1.msra.mxu0 0.0
  %589 = vmatprep.subr.mxu0 0.0
  %590 = vmatpush1.msra.mxu0 0.0
  %591 = vmatprep.subr.mxu0 0.0
  %592 = vmatpush1.msra.mxu0 0.0
  %593 = vmatprep.subr.mxu0 0.0
  %594 = vmatpush1.msra.mxu0 0.0
  %595 = vmatprep.subr.mxu0 0.0
  %596 = vmatpush1.msra.mxu0 0.0
  %597 = vmatprep.subr.mxu0 0.0
  %598 = vmatpush1.msra.mxu0 0.0
  %599 = vmatprep.subr.mxu0 0.0
  %600 = vmatpush1.msra.mxu0 0.0
  %601 = vmatprep.subr.mxu0 0.0
  %602 = vmatpush1.msra.mxu0 0.0
  %603 = vmatprep.subr.mxu0 0.0
  %604 = vmatpush1.msra.mxu0 0.0
  %605 = vmatprep.subr.mxu0 0.0
  %606 = vmatpush1.msra.mxu0 0.0
  %607 = vmatprep.subr.mxu0 0.0
  %608 = vmatpush1.msra.mxu0 0.0
  %609 = vmatprep.subr.mxu0 0.0
  %610 = vmatpush1.msra.mxu0 0.0
  %611 = vmatprep.subr.mxu0 0.0
  %612 = vmatpush1.msra.mxu0 0.0
  %613 = vmatprep.subr.mxu0 0.0
  %614 = vmatpush1.msra.mxu0 0.0
  %615 = vmatprep.subr.mxu0 0.0
  %616 = vmatpush1.msra.mxu0 0.0
  %617 = vmatprep.subr.mxu0 0.0
  %618 = vmatpush1.msra.mxu0 0.0
  %619 = vmatprep.subr.mxu0 0.0
  %620 = vmatpush1.msra.mxu0 0.0
  %621 = vmatprep.subr.mxu0 0.0
  %622 = vmatpush1.msra.mxu0 0.0
  %623 = vmatprep.subr.mxu0 0.0
  %624 = vmatpush1.msra.mxu0 0.0
  %625 = vmatprep.subr.mxu0 0.0
  %626 = vmatpush1.msra.mxu0 0.0
  %627 = vmatprep.subr.mxu0 0.0
  %628 = vmatpush1.msra.mxu0 0.0
  %629 = vmatprep.subr.mxu0 0.0
  %630 = vmatpush1.msra.mxu0 0.0
  %631 = vmatprep.subr.mxu0 0.0
  %632 = vmatpush1.msra.mxu0 0.0
  %633 = vmatprep.subr.mxu0 0.0
  %634 = vmatpush1.msra.mxu0 0.0
  %635 = vmatprep.subr.mxu0 0.0
  %636 = vmatpush1.msra.mxu0 0.0
  %637 = vmatprep.subr.mxu0 0.0
  %638 = vmatpush1.msra.mxu0 0.0
  %639 = vmatprep.mubr.f32.mxu0 0.0
  %640 = vmatmul.mubr.f32.gmra.mrb[0].mxu0 %v573
  %v641 = vpop.f32.mrb[0].mxu0
  %v642 = vadd.f32 %v571, %v641
  %v643 = vpop.f32.mrb[0].mxu0
  %644 = vdwg.mxu0
  %v645 = vsel %vm26, %v642, 0.0
  %v646 = vrot.slane %v645, 4
  %v647 = vadd.f32 %v645, %v646
  %v648 = vrot.slane %v647, 2
  %v649 = vadd.f32 %v647, %v648
  %v650 = vrot.slane %v649, 1
  %v651 = vadd.f32 %v649, %v650
  %v652 = vmul.f32 %v651, %v108
  %v653 = vsub.f32 %v642, %v652
  %v654 = vmul.f32 %v653, %v653
  %v655 = vsel %vm26, %v654, 0.0
  %v656 = vrot.slane %v655, 4
  %v657 = vadd.f32 %v655, %v656
  %v658 = vrot.slane %v657, 2
  %v659 = vadd.f32 %v657, %v658
  %v660 = vrot.slane %v659, 1
  %v661 = vadd.f32 %v659, %v660
  %v662 = vmul.f32 %v661, %v108
  %v663 = vadd.f32 %v662, 1e-05
  %v664 = vrsqrt.pop %v663
  %v665 = vmul.f32 %v653, %v664
  %v666 = vlaneseq
  %v667 = vshrl.u32 %v666, 7
  %v668 = vsub.s32 6, %v667
  %v669 = vrot.slane %v12, %v668
  %v670 = vmul.f32 %v665, %v669
  %v671 = vlaneseq
  %v672 = vshrl.u32 %v671, 7
  %v673 = vsub.s32 7, %v672
  %v674 = vrot.slane %v12, %v673
  %v675 = vadd.f32 %v670, %v674
  %v676 = vsel %vm26, %v675, %v337
  %vm677 = vcmask 785408
  %v678 = vsel %vm677, %v676, 0.0
  %679 = vst [vmem:[%s2] sm:$0xff] %v678
  // Predicated region
  $region10: #{vae_forward.1} parent=0 // pred_check
    _
  $region11: #{vae_forward.1} parent=0 // pred_check_branch
    %681 = sbr.rel (0) target = $region13
  $region12: #{vae_forward.1} parent=0 // pred_region
    _
  $region13: #{vae_forward.1} parent=0 // pred_fallthru
    _
  // Predicated region
  $region14: #{vae_forward.1} parent=0 // pred_check
    _
  $region15: #{vae_forward.1} parent=0 // pred_check_branch
    %683 = sbr.rel (0) target = $region17
  $region16: #{vae_forward.1} parent=0 // pred_region
    _
  $region17: #{vae_forward.1} parent=0 // pred_fallthru
    _

</llo_original>
